<compile_context>
chip_gen: v6e
topology: v6e:2x2x1
jax: 0.10.0
libtpu: 0.0.40
codegen_flags: <defaults>
</compile_context>

<pallas_src>
import jax
import jax.numpy as jnp
from jax.experimental import pallas as pl
from jax.experimental.pallas import tpu as pltpu


def _reslin_matmul_kernel(x_ref, w_ref, out_ref):
    # x_ref:   (tb, K)      K = 3 * C_in (branch-concatenated contraction dim)
    # w_ref:   (K, C_out)   folded effective weight (resident, tiny)
    # out_ref: (tb, C_out)  unpadded output block
    out_ref[...] = jnp.dot(
        x_ref[...], w_ref[...], preferred_element_type=jnp.float32
    ).astype(out_ref.dtype)


def fold_weights(w0_stack, wres_stack):
    """Fold residual chains + branch concat into one [3*C_in, C_out] matrix.

    Valid because Block.forward applies no bias and no nonlinearity:
        y + y @ W == y @ (I + W)
    w0_stack:   (3, C_in, C_out)       (already transposed: W.T of nn.Linear)
    wres_stack: (3, L, C_out, C_out)
    Precompute once per parameter set (batch independent).
    """
    c_out = w0_stack.shape[-1]
    eye = jnp.eye(c_out, dtype=w0_stack.dtype)
    weff = w0_stack
    for l in range(wres_stack.shape[1]):
        weff = jnp.matmul(weff, eye + wres_stack[:, l])  # batched over branches
    return weff.reshape(-1, c_out)  # (3 * C_in, C_out)


def reslin_forward(x, w_cat, *, tb_max=4096):
    """x: [B, 3, C_in] float32; w_cat: [3*C_in, C_out] (pre-folded weight)."""
    B, nbranch, c_in = x.shape
    K, c_out = w_cat.shape
    assert K == nbranch * c_in

    # Free reshape (no transpose): branch axis folds into the contraction dim,
    # matching the row ordering of w_cat.
    x_flat = x.reshape(B, K)

    # Batch tiling: large tiles to amortize per-grid-step overhead, capped so
    # double-buffered tiles stay small (~<4 MiB at tb=4096, K=96, C_out=16),
    # and so large B produces multiple "parallel" steps for v7x's 2 TCs.
    tb = min(B, tb_max)
    grid = (pl.cdiv(B, tb),)

    return pl.pallas_call(
        _reslin_matmul_kernel,
        out_shape=jax.ShapeDtypeStruct((B, c_out), jnp.float32),
        grid_spec=pltpu.PrefetchScalarGridSpec(
            num_scalar_prefetch=0,
            grid=grid,
            in_specs=[
                pl.BlockSpec((tb, K), lambda i: (i, 0)),
                pl.BlockSpec((K, c_out), lambda i: (0, 0)),  # weight resident
            ],
            out_specs=pl.BlockSpec((tb, c_out), lambda i: (i, 0)),
        ),
        compiler_params=pltpu.CompilerParams(
            dimension_semantics=("parallel",),
            vmem_limit_bytes=32 * 1024 * 1024,
        ),
    )(x_flat, w_cat)


def reslin_reference(x, w0_stack, wres_stack):
    # Pure-JAX f32 reference mirroring the PyTorch forward exactly (no fold).
    outs = []
    for b in range(3):
        y = x[:, b, :] @ w0_stack[b]
        for l in range(wres_stack.shape[1]):
            y = y + y @ wres_stack[b, l]
        outs.append(y)
    return outs[0] + outs[1] + outs[2]


if __name__ == "__main__":
    # config mirroring ResLin(configs)
    config = dict(in_channels=32, out_channels=16, bias=False, num_res_layer=2)
    B = 8
    C_in, C_out, L = config["in_channels"], config["out_channels"], config["num_res_layer"]

    key = jax.random.PRNGKey(0)
    kx, k0, kr = jax.random.split(key, 3)

    x = jax.random.normal(kx, (B, 3, C_in), dtype=jnp.float32)

    # First Block per branch: is_zero_init=False -> uniform(-0.1, 0.1); bias=False.
    # nn.Linear weight W is [C_out, C_in]; we store W.T = [C_in, C_out].
    w0_stack = jax.random.uniform(k0, (3, C_in, C_out), jnp.float32, -0.1, 0.1)

    # The PyTorch module zero-inits the residual Blocks; use non-zero values here
    # so the folded residual chain is actually exercised by the check.
    wres_stack = jax.random.uniform(kr, (3, L, C_out, C_out), jnp.float32, -0.1, 0.1)

    # Precompute the folded weight once (batch independent, hoisted out of the
    # per-call path per perf review).
    w_cat = fold_weights(w0_stack, wres_stack)
    w_cat = jax.block_until_ready(w_cat)

    ref = reslin_reference(x, w0_stack, wres_stack)

    out = reslin_forward(x, w_cat)
    out = jax.block_until_ready(out)
    assert out.shape == (B, C_out)
    assert jnp.allclose(out, ref, atol=1e-4, rtol=1e-4)

    # Exercise the multi-step grid path (tb cap + cdiv grid, masked last block).
    B2 = 300  # deliberately not a multiple of the tile
    x2 = jax.random.normal(kx, (B2, 3, C_in), dtype=jnp.float32)
    out2 = reslin_forward(x2, w_cat, tb_max=128)
    out2 = jax.block_until_ready(out2)
    ref2 = reslin_reference(x2, w0_stack, wres_stack)
    assert out2.shape == (B2, C_out)
    assert jnp.allclose(out2, ref2, atol=1e-4, rtol=1e-4)

    print("KERNEL_OK")
</pallas_src>

<mosaic_0001>
module attributes {stable_mosaic.version = 11 : i64} {
  func.func @_reslin_matmul_kernel(%arg0: i32, %arg1: memref<8x96xf32, #tpu.memory_space<vmem>>, %arg2: memref<96x16xf32, #tpu.memory_space<vmem>>, %arg3: memref<8x16xf32, #tpu.memory_space<vmem>>) attributes {dimension_semantics = [#tpu.dimension_semantics<parallel>], iteration_bounds = array<i64: 1>, scalar_prefetch = 0 : i64, scratch_operands = 0 : i64, tpu.core_type = #tpu.core_type<tc>, window_params = [{transform_indices = @transform_0, window_bounds = array<i64: 8, 96>}, {pipeline_mode = #tpu.pipeline_mode<synchronous>, transform_indices = @transform_1, window_bounds = array<i64: 96, 16>}, {transform_indices = @transform_2, window_bounds = array<i64: 8, 16>}]} {
    %c0 = arith.constant 0 : index
    %c0_0 = arith.constant 0 : index
    %0 = vector.load %arg1[%c0, %c0_0] : memref<8x96xf32, #tpu.memory_space<vmem>>, vector<8x96xf32>
    %c0_1 = arith.constant 0 : index
    %c0_2 = arith.constant 0 : index
    %1 = vector.load %arg2[%c0_1, %c0_2] : memref<96x16xf32, #tpu.memory_space<vmem>>, vector<96x16xf32>
    %cst = arith.constant dense<0.000000e+00> : vector<8x16xf32>
    %2 = tpu.matmul %0, %1, %cst {dimension_numbers = #tpu.dot_dimension_numbers<[1], [0], [0], [1], [0, 0, 1, 1], [], []>} : vector<8x96xf32>, vector<96x16xf32>, vector<8x16xf32> -> vector<8x16xf32>
    %c0_3 = arith.constant 0 : index
    %c0_4 = arith.constant 0 : index
    %3 = vector.load %arg3[%c0_3, %c0_4] : memref<8x16xf32, #tpu.memory_space<vmem>>, vector<8x16xf32>
    tpu.vector_store %arg3[%c0_3, %c0_4], %2 {strides = array<i32>} : memref<8x16xf32, #tpu.memory_space<vmem>>, vector<8x16xf32>,
    return
  }
  func.func @transform_0(%arg0: i32) -> (i32, i32) {
    %c0_i32 = arith.constant 0 : i32
    %c0_i32_0 = arith.constant 0 : i32
    return %arg0, %c0_i32 : i32, i32
  }
  func.func @transform_1(%arg0: i32) -> (i32, i32) {
    %c0_i32 = arith.constant 0 : i32
    %c0_i32_0 = arith.constant 0 : i32
    %c0_i32_1 = arith.constant 0 : i32
    return %c0_i32, %c0_i32_0 : i32, i32
  }
  func.func @transform_2(%arg0: i32) -> (i32, i32) {
    %c0_i32 = arith.constant 0 : i32
    %c0_i32_0 = arith.constant 0 : i32
    return %arg0, %c0_i32 : i32, i32
  }
}

</mosaic_0001>

<llo_original>
// kernel: tpu_custom_call.1
$region0: #{tpu_custom_call.1}
  #allocation0 [shape = 'u32[]', space=smem, size = 0x4, offset = 0x4, fixed_abs, tag = 'smem constant byte address 0x4 - core index']
  #allocation1 [shape = 'u32[144,128]{1,0:T(1,128)}', space=vmem, size = 0x12000, scoped, tag = 'internal scratch']
  %s0 = inlined_call_operand.vmem [shape: f32[8,96], index: 0, kind: input, shape index: {}]
  %s1 = inlined_call_operand.vmem [shape: f32[96,16], index: 1, kind: input, shape index: {}]
  %s2 = inlined_call_operand.hbm [shape: f32[8,16], index: 2, kind: output, shape index: {}]
  %s3 = sld [smem:[#allocation0]]
  $region18: #{tpu_custom_call.1} parent=0
    _
  %s5 = ssub.s32 1, %s3
  %s6 = scalar_select 0, %s5, %s3
  $region1: #{tpu_custom_call.1} parent=0
    #allocation2 [shape = 'u8[4096]{0}', space=vmem, size = 0x1000, scoped, tag = 'output window, operand 0, single buffered']
    #allocation3 [shape = 's32[1]{0}', space=sflag, size = 0x4, scoped, tag = 'scoped memory for tpu_custom_call.1']
    %7 = vsyncpa [#allocation3], 0
    // Predicated region
    $region2: #{tpu_custom_call.1} parent=1 // pred_check
      _
    $region3: #{tpu_custom_call.1} parent=1 // pred_check_branch
      %9 = sbr.rel (0) target = $region5
    $region4: #{tpu_custom_call.1} parent=1 // pred_region
      _
    $region5: #{tpu_custom_call.1} parent=1 // pred_fallthru
      _
    // Predicated region
    $region6: #{tpu_custom_call.1} parent=1 // pred_check
      _
    $region7: #{tpu_custom_call.1} parent=1 // pred_check_branch
      %11 = sbr.rel (0) target = $region9
    $region8: #{tpu_custom_call.1} parent=1 // pred_region
      _
    $region9: #{tpu_custom_call.1} parent=1 // pred_fallthru
      _
    %v12 = vld [vmem:[%s0] sm:$0xff]
    %v13 = vld [vmem:[%s1] sm:$0xff]
    %v14 = vld [vmem:[%s1 + $0x8] sm:$0xff]
    %v15 = vld [vmem:[%s1 + $0x10] sm:$0xff]
    %v16 = vld [vmem:[%s1 + $0x18] sm:$0xff]
    %v17 = vld [vmem:[%s1 + $0x20] sm:$0xff]
    %v18 = vld [vmem:[%s1 + $0x28] sm:$0xff]
    %v19 = vld [vmem:[%s1 + $0x30] sm:$0xff]
    %v20 = vld [vmem:[%s1 + $0x38] sm:$0xff]
    %v21 = vld [vmem:[%s1 + $0x40] sm:$0xff]
    %v22 = vld [vmem:[%s1 + $0x48] sm:$0xff]
    %v23 = vld [vmem:[%s1 + $0x50] sm:$0xff]
    %v24 = vld [vmem:[%s1 + $0x58] sm:$0xff]
    %vm25 = vcmask 785408
    %v27 = vsel %vm25, %v12, 0
    %29 = vmatprep.subr.mxu0 0.0
    %30 = vmatpush1.msra.mxu0 0.0
    %31 = vmatprep.subr.mxu0 0.0
    %32 = vmatpush1.msra.mxu0 0.0
    %33 = vmatprep.subr.mxu0 0.0
    %34 = vmatpush1.msra.mxu0 0.0
    %35 = vmatprep.subr.mxu0 0.0
    %36 = vmatpush1.msra.mxu0 0.0
    %37 = vmatprep.subr.mxu0 0.0
    %38 = vmatpush1.msra.mxu0 %v24
    %39 = vmatprep.subr.mxu0 0.0
    %40 = vmatpush1.msra.mxu0 %v23
    %41 = vmatprep.subr.mxu0 0.0
    %42 = vmatpush1.msra.mxu0 %v22
    %43 = vmatprep.subr.mxu0 0.0
    %44 = vmatpush1.msra.mxu0 %v21
    %45 = vmatprep.subr.mxu0 0.0
    %46 = vmatpush1.msra.mxu0 %v20
    %47 = vmatprep.subr.mxu0 0.0
    %48 = vmatpush1.msra.mxu0 %v19
    %49 = vmatprep.subr.mxu0 0.0
    %50 = vmatpush1.msra.mxu0 %v18
    %51 = vmatprep.subr.mxu0 0.0
    %52 = vmatpush1.msra.mxu0 %v17
    %53 = vmatprep.subr.mxu0 0.0
    %54 = vmatpush1.msra.mxu0 %v16
    %55 = vmatprep.subr.mxu0 0.0
    %56 = vmatpush1.msra.mxu0 %v15
    %57 = vmatprep.subr.mxu0 0.0
    %58 = vmatpush1.msra.mxu0 %v14
    %59 = vmatprep.subr.mxu0 0.0
    %60 = vmatpush1.msra.mxu0 %v13
    %61 = vmatprep.subr.mxu0 0.0
    %62 = vmatpush2.msra.mxu0 0.0
    %63 = vmatprep.subr.mxu0 0.0
    %64 = vmatpush2.msra.mxu0 0.0
    %65 = vmatprep.subr.mxu0 0.0
    %66 = vmatpush2.msra.mxu0 0.0
    %67 = vmatprep.subr.mxu0 0.0
    %68 = vmatpush2.msra.mxu0 0.0
    %69 = vmatprep.subr.mxu0 0.0
    %70 = vmatpush2.msra.mxu0 0.0
    %71 = vmatprep.subr.mxu0 0.0
    %72 = vmatpush2.msra.mxu0 0.0
    %73 = vmatprep.subr.mxu0 0.0
    %74 = vmatpush2.msra.mxu0 0.0
    %75 = vmatprep.subr.mxu0 0.0
    %76 = vmatpush2.msra.mxu0 0.0
    %77 = vmatprep.subr.mxu0 0.0
    %78 = vmatpush2.msra.mxu0 0.0
    %79 = vmatprep.subr.mxu0 0.0
    %80 = vmatpush2.msra.mxu0 0.0
    %81 = vmatprep.subr.mxu0 0.0
    %82 = vmatpush2.msra.mxu0 0.0
    %83 = vmatprep.subr.mxu0 0.0
    %84 = vmatpush2.msra.mxu0 0.0
    %85 = vmatprep.subr.mxu0 0.0
    %86 = vmatpush2.msra.mxu0 0.0
    %87 = vmatprep.subr.mxu0 0.0
    %88 = vmatpush2.msra.mxu0 0.0
    %89 = vmatprep.subr.mxu0 0.0
    %90 = vmatpush2.msra.mxu0 0.0
    %91 = vmatprep.subr.mxu0 0.0
    %92 = vmatpush2.msra.mxu0 0.0
    %93 = vmatprep.mubr.f32.mxu0 0.0
    %94 = vmatmul.mubr.f32.gmra.mxu0 %v27
    %v95 = vpop.f32.mrf.mxu0
    %v96 = vadd.f32 0.0, %v95
    %v97 = vpop.f32.mrf.mxu0
    %98 = vdwg.mxu0
    %vm99 = vcmask 130048
    %100 = vst.msk [vmem:[#allocation2] sm:$0xff] %vm99, %v96
    // Predicated region
    $region10: #{tpu_custom_call.1} parent=1 // pred_check
      _
    $region11: #{tpu_custom_call.1} parent=1 // pred_check_branch
      %102 = sbr.rel (0) target = $region13
    $region12: #{tpu_custom_call.1} parent=1 // pred_region
      %s104 = ssub.s32 128, 128
      %105 = vsyncadd [#allocation3], %s104
      %s107 = sshll.u32 [#allocation2], 4
      %s108 = int_to_ptr.vmem [resolvable:$true] %s107
      %110 = dma.vmem_to_hbm [thread:$0]  %s108, 128, %s2, [#allocation3]
    $region13: #{tpu_custom_call.1} parent=1 // pred_fallthru
      _
    // Predicated region
    $region14: #{tpu_custom_call.1} parent=1 // pred_check
      _
    $region15: #{tpu_custom_call.1} parent=1 // pred_check_branch
      %112 = sbr.rel (0) target = $region17
    $region16: #{tpu_custom_call.1} parent=1 // pred_region
      %113 = dma.done [#allocation3], 128
    $region17: #{tpu_custom_call.1} parent=1 // pred_fallthru
      _
    %114 = vsyncpa [#allocation3], 1

</llo_original>
